<compile_context>
chip_gen: v6e
topology: v6e:2x2x1
jax: 0.10.0
libtpu: 0.0.40
codegen_flags: <defaults>
</compile_context>

<pallas_src>
import functools

import jax
import jax.numpy as jnp
from jax.experimental import pallas as pl
from jax.experimental.pallas import tpu as pltpu


def _round_up(x, m):
    return (x + m - 1) // m * m


def _dense_kernel(w_ref, x_ref, b_ref, o_ref, acc_ref, *, activation_type):
    k = pl.program_id(2)

    @pl.when(k == 0)
    def _():
        acc_ref[...] = jnp.zeros_like(acc_ref)

    acc_ref[...] += jnp.dot(
        w_ref[...], x_ref[...], preferred_element_type=jnp.float32)

    @pl.when(k == pl.num_programs(2) - 1)
    def _():
        # Bias + activation only once per output tile (epilogue).
        n = acc_ref[...] + b_ref[...].astype(jnp.float32)  # (tm,1) broadcasts over tn
        if activation_type == 'tanh':
            a = jnp.tanh(n)
        elif activation_type == 'sigmoid':
            a = jax.nn.sigmoid(n)
        elif activation_type == 'relu':
            a = jnp.maximum(n, 0.0)
        else:  # 'linear'
            a = n
        o_ref[...] = a.astype(o_ref.dtype)


def dense_forward(w, b, x, activation_type='tanh', *,
                  compute_dtype=jnp.bfloat16, tm=256, tn=256, tk=512):
    """Pallas Dense forward.  w: (O, I), b: (O, 1), x: (I, B) -> (O, B) f32."""
    O, I = w.shape
    I2, B = x.shape
    assert I2 == I, "w / x shape mismatch"

    # Tile sizes: clamp to the (padded) problem dims; keep TPU alignment:
    # tm multiple of 8 (sublane), tn / tk multiples of 128 (lane).
    tm = min(tm, _round_up(O, 8))
    tn = min(tn, _round_up(B, 128))
    tk = min(tk, _round_up(I, 128))

    O_p = _round_up(O, tm)
    B_p = _round_up(B, tn)
    I_p = _round_up(I, tk)

    # Zero-pad: zeros along K do not change the matmul; padded output
    # rows/cols are sliced off below.
    w_p = jnp.zeros((O_p, I_p), compute_dtype).at[:O, :I].set(
        w.astype(compute_dtype))
    x_p = jnp.zeros((I_p, B_p), compute_dtype).at[:I, :B].set(
        x.astype(compute_dtype))
    b_p = jnp.zeros((O_p, 1), jnp.float32).at[:O, :].set(
        b.astype(jnp.float32))

    grid = (O_p // tm, B_p // tn, I_p // tk)
    kernel = functools.partial(_dense_kernel, activation_type=activation_type)

    transcendentals = O * B if activation_type in ('tanh', 'sigmoid') else 0
    cost = pl.CostEstimate(
        flops=2 * O * I * B,
        transcendentals=transcendentals,
        bytes_accessed=4 * (O * I + I * B + O * B + O))

    out_p = pl.pallas_call(
        kernel,
        out_shape=jax.ShapeDtypeStruct((O_p, B_p), jnp.float32),
        grid_spec=pltpu.PrefetchScalarGridSpec(
            num_scalar_prefetch=0,
            grid=grid,
            in_specs=[
                pl.BlockSpec((tm, tk), lambda i, j, k: (i, k)),   # w tile
                pl.BlockSpec((tk, tn), lambda i, j, k: (k, j)),   # x tile
                pl.BlockSpec((tm, 1), lambda i, j, k: (i, 0)),    # bias: i only
            ],
            out_specs=pl.BlockSpec((tm, tn), lambda i, j, k: (i, j)),
            scratch_shapes=[pltpu.VMEM((tm, tn), jnp.float32)],
        ),
        compiler_params=pltpu.CompilerParams(
            dimension_semantics=("parallel", "parallel", "arbitrary")),
        cost_estimate=cost,
    )(w_p, x_p, b_p)

    return out_p[:O, :B]


if __name__ == "__main__":
    input_size = 32
    output_size = 16
    batch = 8
    weight_factory = 0.01

    key = jax.random.PRNGKey(0)
    kw, kb, kx = jax.random.split(key, 3)

    # Deterministic parameter init mirroring: weight_factory * randn(...)
    w = weight_factory * jax.random.normal(
        kw, (output_size, input_size), dtype=jnp.float32)
    b = weight_factory * jax.random.normal(
        kb, (output_size, 1), dtype=jnp.float32)
    x = jax.random.normal(kx, (input_size, batch), dtype=jnp.float32)

    ref = jnp.tanh(w @ x + b)

    # f32 compute path (tight tolerance).
    out_f32 = dense_forward(w, b, x, activation_type='tanh',
                            compute_dtype=jnp.float32)
    out_f32 = jax.block_until_ready(out_f32)
    assert out_f32.shape == (output_size, batch)
    assert jnp.allclose(out_f32, ref, atol=1e-5, rtol=1e-5), "f32 mismatch"

    # bf16 operands + f32 accumulation (MXU-peak path, relaxed tolerance).
    out_bf16 = dense_forward(w, b, x, activation_type='tanh',
                             compute_dtype=jnp.bfloat16)
    out_bf16 = jax.block_until_ready(out_bf16)
    assert out_bf16.shape == (output_size, batch)
    assert jnp.allclose(out_bf16, ref, atol=2e-2, rtol=2e-2), "bf16 mismatch"

    print("KERNEL_OK")
</pallas_src>

<mosaic_0001>
module attributes {stable_mosaic.version = 11 : i64} {
  func.func @_dense_kernel(%arg0: i32, %arg1: i32, %arg2: i32, %arg3: memref<16x128xf32, #tpu.memory_space<vmem>>, %arg4: memref<128x128xf32, #tpu.memory_space<vmem>>, %arg5: memref<16x1xf32, #tpu.memory_space<vmem>>, %arg6: memref<16x128xf32, #tpu.memory_space<vmem>>, %arg7: memref<16x128xf32, #tpu.memory_space<vmem>>) attributes {dimension_semantics = [#tpu.dimension_semantics<parallel>, #tpu.dimension_semantics<parallel>, #tpu.dimension_semantics<arbitrary>], iteration_bounds = array<i64: 1, 1, 1>, scalar_prefetch = 0 : i64, scratch_operands = 1 : i64, tpu.core_type = #tpu.core_type<tc>, window_params = [{transform_indices = @transform_0, window_bounds = array<i64: 16, 128>}, {transform_indices = @transform_1, window_bounds = array<i64: 128, 128>}, {transform_indices = @transform_2, window_bounds = array<i64: 16, 1>}, {transform_indices = @transform_3, window_bounds = array<i64: 16, 128>}]} {
    %c0_i32 = arith.constant 0 : i32
    %0 = arith.cmpi eq, %arg2, %c0_i32 : i32
    %1 = arith.extui %0 : i1 to i32
    %c0_i32_0 = arith.constant 0 : i32
    %2 = arith.cmpi ne, %1, %c0_i32_0 : i32
    scf.if %2 {
      %cst_10 = arith.constant 0.000000e+00 : f32
      %12 = vector.broadcast %cst_10 : f32 to vector<16x128xf32>
      %c0_11 = arith.constant 0 : index
      %c0_12 = arith.constant 0 : index
      %13 = vector.load %arg7[%c0_11, %c0_12] : memref<16x128xf32, #tpu.memory_space<vmem>>, vector<16x128xf32>
      tpu.vector_store %arg7[%c0_11, %c0_12], %12 {strides = array<i32>} : memref<16x128xf32, #tpu.memory_space<vmem>>, vector<16x128xf32>,
    } else {
    }
    %c0 = arith.constant 0 : index
    %c0_1 = arith.constant 0 : index
    %3 = vector.load %arg7[%c0, %c0_1] : memref<16x128xf32, #tpu.memory_space<vmem>>, vector<16x128xf32>
    %c0_2 = arith.constant 0 : index
    %c0_3 = arith.constant 0 : index
    %4 = vector.load %arg3[%c0_2, %c0_3] : memref<16x128xf32, #tpu.memory_space<vmem>>, vector<16x128xf32>
    %c0_4 = arith.constant 0 : index
    %c0_5 = arith.constant 0 : index
    %5 = vector.load %arg4[%c0_4, %c0_5] : memref<128x128xf32, #tpu.memory_space<vmem>>, vector<128x128xf32>
    %cst = arith.constant dense<0.000000e+00> : vector<16x128xf32>
    %6 = tpu.matmul %4, %5, %cst {dimension_numbers = #tpu.dot_dimension_numbers<[1], [0], [0], [1], [0, 0, 1, 1], [], []>} : vector<16x128xf32>, vector<128x128xf32>, vector<16x128xf32> -> vector<16x128xf32>
    %7 = arith.addf %3, %6 : vector<16x128xf32>
    %c0_6 = arith.constant 0 : index
    %c0_7 = arith.constant 0 : index
    %8 = vector.load %arg7[%c0_6, %c0_7] : memref<16x128xf32, #tpu.memory_space<vmem>>, vector<16x128xf32>
    tpu.vector_store %arg7[%c0_6, %c0_7], %7 {strides = array<i32>} : memref<16x128xf32, #tpu.memory_space<vmem>>, vector<16x128xf32>,
    %c0_i32_8 = arith.constant 0 : i32
    %9 = arith.cmpi eq, %arg2, %c0_i32_8 : i32
    %10 = arith.extui %9 : i1 to i32
    %c0_i32_9 = arith.constant 0 : i32
    %11 = arith.cmpi ne, %10, %c0_i32_9 : i32
    scf.if %11 {
      %c0_10 = arith.constant 0 : index
      %c0_11 = arith.constant 0 : index
      %12 = vector.load %arg7[%c0_10, %c0_11] : memref<16x128xf32, #tpu.memory_space<vmem>>, vector<16x128xf32>
      %c0_12 = arith.constant 0 : index
      %c0_13 = arith.constant 0 : index
      %13 = vector.load %arg5[%c0_12, %c0_13] : memref<16x1xf32, #tpu.memory_space<vmem>>, vector<16x1xf32>
      %14 = vector.broadcast %13 : vector<16x1xf32> to vector<16x128xf32>
      %15 = arith.addf %12, %14 : vector<16x128xf32>
      %16 = math.tanh %15 : vector<16x128xf32>
      %c0_14 = arith.constant 0 : index
      %c0_15 = arith.constant 0 : index
      %17 = vector.load %arg6[%c0_14, %c0_15] : memref<16x128xf32, #tpu.memory_space<vmem>>, vector<16x128xf32>
      tpu.vector_store %arg6[%c0_14, %c0_15], %16 {strides = array<i32>} : memref<16x128xf32, #tpu.memory_space<vmem>>, vector<16x128xf32>,
    } else {
    }
    return
  }
  func.func @transform_0(%arg0: i32, %arg1: i32, %arg2: i32) -> (i32, i32) {
    %c0_i32 = arith.constant 0 : i32
    return %arg0, %arg2 : i32, i32
  }
  func.func @transform_1(%arg0: i32, %arg1: i32, %arg2: i32) -> (i32, i32) {
    %c0_i32 = arith.constant 0 : i32
    return %arg2, %arg1 : i32, i32
  }
  func.func @transform_2(%arg0: i32, %arg1: i32, %arg2: i32) -> (i32, i32) {
    %c0_i32 = arith.constant 0 : i32
    %c0_i32_0 = arith.constant 0 : i32
    return %arg0, %c0_i32 : i32, i32
  }
  func.func @transform_3(%arg0: i32, %arg1: i32, %arg2: i32) -> (i32, i32) {
    %c0_i32 = arith.constant 0 : i32
    return %arg0, %arg1 : i32, i32
  }
}

</mosaic_0001>

<llo_original>
// kernel: tpu_custom_call.1
$region0: #{tpu_custom_call.1}
  #allocation0 [shape = 'u32[]', space=smem, size = 0x4, offset = 0x4, fixed_abs, tag = 'smem constant byte address 0x4 - core index']
  #allocation1 [shape = 'u32[144,128]{1,0:T(1,128)}', space=vmem, size = 0x12000, scoped, tag = 'internal scratch']
  #allocation2 [shape = 'f32[16,128]{1,0:T(8,128)}', space=vmem, size = 0x2000, scoped, tag = 'scratch operand']
  %s0 = inlined_call_operand.vmem [shape: f32[16,128], index: 0, kind: input, shape index: {}]
  %s1 = inlined_call_operand.hbm [shape: f32[128,128], index: 1, kind: input, shape index: {}]
  %s2 = inlined_call_operand.vmem [shape: f32[16,1], index: 2, kind: input, shape index: {}]
  %s3 = inlined_call_operand.hbm [shape: f32[16,128], index: 3, kind: output, shape index: {}]
  %s4 = sld [smem:[#allocation0]]
  $region34: #{tpu_custom_call.1} parent=0
    _
  %s6 = ssub.s32 1, %s4
  %s7 = scalar_select 0, %s6, %s4
  $region1: #{tpu_custom_call.1} parent=0
    #allocation3 [shape = 'u8[65536]{0}', space=vmem, size = 0x10000, scoped, tag = 'input window, operand 1, single buffered']
    #allocation4 [shape = 's32[1]{0}', space=sflag, size = 0x4, scoped, tag = 'scoped memory for tpu_custom_call.1']
    #allocation5 [shape = 's32[1]{0}', space=sflag, size = 0x4, scoped, tag = 'scoped memory for tpu_custom_call.1']
    #allocation6 [shape = 'u8[8192]{0}', space=vmem, size = 0x2000, scoped, tag = 'output window, operand 0, single buffered']
    %8 = vsyncpa [#allocation4], 0
    %9 = vsyncpa [#allocation5], 0
    // Predicated region
    $region2: #{tpu_custom_call.1} parent=1 // pred_check
      _
    $region3: #{tpu_custom_call.1} parent=1 // pred_check_branch
      %11 = sbr.rel (0) target = $region5
    $region4: #{tpu_custom_call.1} parent=1 // pred_region
      _
    $region5: #{tpu_custom_call.1} parent=1 // pred_fallthru
      _
    // Predicated region
    $region6: #{tpu_custom_call.1} parent=1 // pred_check
      _
    $region7: #{tpu_custom_call.1} parent=1 // pred_check_branch
      %13 = sbr.rel (0) target = $region9
    $region8: #{tpu_custom_call.1} parent=1 // pred_region
      %s15 = ssub.s32 2048, 2048
      %16 = vsyncadd [#allocation4], %s15
      %s17 = sshll.u32 [#allocation3], 4
      %s18 = int_to_ptr.vmem [resolvable:$true] %s17
      %23 = dma.hbm_to_vmem [thread:$0]  %s1, 2048, %s18, [#allocation4], 128, 128, 8
    $region9: #{tpu_custom_call.1} parent=1 // pred_fallthru
      _
    // Predicated region
    $region10: #{tpu_custom_call.1} parent=1 // pred_check
      _
    $region11: #{tpu_custom_call.1} parent=1 // pred_check_branch
      %25 = sbr.rel (0) target = $region13
    $region12: #{tpu_custom_call.1} parent=1 // pred_region
      _
    $region13: #{tpu_custom_call.1} parent=1 // pred_fallthru
      _
    // Predicated region
    $region14: #{tpu_custom_call.1} parent=1 // pred_check
      _
    $region15: #{tpu_custom_call.1} parent=1 // pred_check_branch
      %27 = sbr.rel (0) target = $region17
    $region16: #{tpu_custom_call.1} parent=1 // pred_region
      %28 = dma.done [#allocation4], 2048
    $region17: #{tpu_custom_call.1} parent=1 // pred_fallthru
      _
    %p29 = scmp.eq.s32.totalorder 0, 0
    // Predicated region
    $region18: #{tpu_custom_call.1} parent=1 // pred_check
      %p30 = pneg %p29
    $region19: #{tpu_custom_call.1} parent=1 // pred_check_branch
      %32 = sbr.rel (%p30) target = $region21
    $region20: #{tpu_custom_call.1} parent=1 // pred_region
      %33 = vst [vmem:[#allocation2] sm:$0xff] 0.0
      %34 = vst [vmem:[#allocation2 + $0x8] sm:$0xff] 0.0
    $region21: #{tpu_custom_call.1} parent=1 // pred_fallthru
      _
    %v35 = vld [vmem:[#allocation2] sm:$0xff]
    %v36 = vld [vmem:[#allocation2 + $0x8] sm:$0xff]
    %v37 = vld [vmem:[%s0] sm:$0xff]
    %v38 = vld [vmem:[%s0 + $0x8] sm:$0xff]
    %v39 = vld [vmem:[#allocation3] sm:$0xff]
    %v40 = vld [vmem:[#allocation3 + $0x8] sm:$0xff]
    %v41 = vld [vmem:[#allocation3 + $0x10] sm:$0xff]
    %v42 = vld [vmem:[#allocation3 + $0x18] sm:$0xff]
    %v43 = vld [vmem:[#allocation3 + $0x20] sm:$0xff]
    %v44 = vld [vmem:[#allocation3 + $0x28] sm:$0xff]
    %v45 = vld [vmem:[#allocation3 + $0x30] sm:$0xff]
    %v46 = vld [vmem:[#allocation3 + $0x38] sm:$0xff]
    %v47 = vld [vmem:[#allocation3 + $0x40] sm:$0xff]
    %v48 = vld [vmem:[#allocation3 + $0x48] sm:$0xff]
    %v49 = vld [vmem:[#allocation3 + $0x50] sm:$0xff]
    %v50 = vld [vmem:[#allocation3 + $0x58] sm:$0xff]
    %v51 = vld [vmem:[#allocation3 + $0x60] sm:$0xff]
    %v52 = vld [vmem:[#allocation3 + $0x68] sm:$0xff]
    %v53 = vld [vmem:[#allocation3 + $0x70] sm:$0xff]
    %v54 = vld [vmem:[#allocation3 + $0x78] sm:$0xff]
    %55 = vmatprep.subr.mxu0 0.0
    %56 = vmatpush1.msra.mxu0 %v54
    %57 = vmatprep.subr.mxu0 0.0
    %58 = vmatpush1.msra.mxu0 %v53
    %59 = vmatprep.subr.mxu0 0.0
    %60 = vmatpush1.msra.mxu0 %v52
    %61 = vmatprep.subr.mxu0 0.0
    %62 = vmatpush1.msra.mxu0 %v51
    %63 = vmatprep.subr.mxu0 0.0
    %64 = vmatpush1.msra.mxu0 %v50
    %65 = vmatprep.subr.mxu0 0.0
    %66 = vmatpush1.msra.mxu0 %v49
    %67 = vmatprep.subr.mxu0 0.0
    %68 = vmatpush1.msra.mxu0 %v48
    %69 = vmatprep.subr.mxu0 0.0
    %70 = vmatpush1.msra.mxu0 %v47
    %71 = vmatprep.subr.mxu0 0.0
    %72 = vmatpush1.msra.mxu0 %v46
    %73 = vmatprep.subr.mxu0 0.0
    %74 = vmatpush1.msra.mxu0 %v45
    %75 = vmatprep.subr.mxu0 0.0
    %76 = vmatpush1.msra.mxu0 %v44
    %77 = vmatprep.subr.mxu0 0.0
    %78 = vmatpush1.msra.mxu0 %v43
    %79 = vmatprep.subr.mxu0 0.0
    %80 = vmatpush1.msra.mxu0 %v42
    %81 = vmatprep.subr.mxu0 0.0
    %82 = vmatpush1.msra.mxu0 %v41
    %83 = vmatprep.subr.mxu0 0.0
    %84 = vmatpush1.msra.mxu0 %v40
    %85 = vmatprep.subr.mxu0 0.0
    %86 = vmatpush1.msra.mxu0 %v39
    %87 = vmatprep.subr.mxu0 0.0
    %88 = vmatpush2.msra.mxu0 0.0
    %89 = vmatprep.subr.mxu0 0.0
    %90 = vmatpush2.msra.mxu0 0.0
    %91 = vmatprep.subr.mxu0 0.0
    %92 = vmatpush2.msra.mxu0 0.0
    %93 = vmatprep.subr.mxu0 0.0
    %94 = vmatpush2.msra.mxu0 0.0
    %95 = vmatprep.subr.mxu0 0.0
    %96 = vmatpush2.msra.mxu0 0.0
    %97 = vmatprep.subr.mxu0 0.0
    %98 = vmatpush2.msra.mxu0 0.0
    %99 = vmatprep.subr.mxu0 0.0
    %100 = vmatpush2.msra.mxu0 0.0
    %101 = vmatprep.subr.mxu0 0.0
    %102 = vmatpush2.msra.mxu0 0.0
    %103 = vmatprep.subr.mxu0 0.0
    %104 = vmatpush2.msra.mxu0 0.0
    %105 = vmatprep.subr.mxu0 0.0
    %106 = vmatpush2.msra.mxu0 0.0
    %107 = vmatprep.subr.mxu0 0.0
    %108 = vmatpush2.msra.mxu0 0.0
    %109 = vmatprep.subr.mxu0 0.0
    %110 = vmatpush2.msra.mxu0 0.0
    %111 = vmatprep.subr.mxu0 0.0
    %112 = vmatpush2.msra.mxu0 0.0
    %113 = vmatprep.subr.mxu0 0.0
    %114 = vmatpush2.msra.mxu0 0.0
    %115 = vmatprep.subr.mxu0 0.0
    %116 = vmatpush2.msra.mxu0 0.0
    %117 = vmatprep.subr.mxu0 0.0
    %118 = vmatpush2.msra.mxu0 0.0
    %119 = vmatprep.mubr.f32.mxu0 0.0
    %120 = vmatmul.mubr.f32.gmra.mxu0 %v37
    %v121 = vpop.f32.mrf.mxu0
    %v122 = vadd.f32 0.0, %v121
    %v123 = vpop.f32.mrf.mxu0
    %124 = vmatprep.mubr.f32.mxu0 0.0
    %125 = vmatmul.mubr.f32.gmra.mxu0 %v38
    %v126 = vpop.f32.mrf.mxu0
    %v127 = vadd.f32 0.0, %v126
    %v128 = vpop.f32.mrf.mxu0
    %129 = vdwg.mxu0
    %v130 = vadd.f32 %v35, %v122
    %v131 = vadd.f32 %v36, %v127
    %132 = vst [vmem:[#allocation2] sm:$0xff] %v130
    %133 = vst [vmem:[#allocation2 + $0x8] sm:$0xff] %v131
    // Predicated region
    $region22: #{tpu_custom_call.1} parent=1 // pred_check
      %p134 = pneg %p29
    $region23: #{tpu_custom_call.1} parent=1 // pred_check_branch
      %136 = sbr.rel (%p134) target = $region25
    $region24: #{tpu_custom_call.1} parent=1 // pred_region
      %v137 = vld [vmem:[#allocation2] sm:$0xff]
      %v138 = vld [vmem:[#allocation2 + $0x8] sm:$0xff]
      %v139 = vld [vmem:[%s2] sm:$0xff]
      %v140 = vld [vmem:[%s2 + $0x8] sm:$0xff]
      %142 = vset.pattern.permute.xlu0 0
      %143 = vperm.xlu0 %142, %v139
      %v144 = vpop.permute.xlu0 %143
      %147 = vset.pattern.permute.xlu0 0
      %148 = vperm.xlu0 %147, %v140
      %v149 = vpop.permute.xlu0 %148
      %v151 = vadd.f32 %v137, %v144
      %v152 = vadd.f32 %v138, %v149
      %v153 = vtanh.pop %v151
      %v154 = vtanh.pop %v152
      %155 = vst [vmem:[#allocation6] sm:$0xff] %v153
      %156 = vst [vmem:[#allocation6 + $0x8] sm:$0xff] %v154
    $region25: #{tpu_custom_call.1} parent=1 // pred_fallthru
      _
    // Predicated region
    $region26: #{tpu_custom_call.1} parent=1 // pred_check
      _
    $region27: #{tpu_custom_call.1} parent=1 // pred_check_branch
      %158 = sbr.rel (0) target = $region29
    $region28: #{tpu_custom_call.1} parent=1 // pred_region
      %s160 = ssub.s32 256, 256
      %161 = vsyncadd [#allocation5], %s160
      %s162 = sshll.u32 [#allocation6], 4
      %s163 = int_to_ptr.vmem [resolvable:$true] %s162
      %168 = dma.vmem_to_hbm [thread:$0]  %s163, 256, %s3, [#allocation5], 128, 128, 8
    $region29: #{tpu_custom_call.1} parent=1 // pred_fallthru
      _
    // Predicated region
    $region30: #{tpu_custom_call.1} parent=1 // pred_check
      _
    $region31: #{tpu_custom_call.1} parent=1 // pred_check_branch
      %170 = sbr.rel (0) target = $region33
    $region32: #{tpu_custom_call.1} parent=1 // pred_region
      %171 = dma.done [#allocation5], 256
    $region33: #{tpu_custom_call.1} parent=1 // pred_fallthru
      _
    %172 = vsyncpa [#allocation4], 1
    %173 = vsyncpa [#allocation5], 1

</llo_original>
